<compile_context>
chip_gen: v7x
topology: tpu7x:2x2x1
jax: 0.10.0
libtpu: 0.0.40
codegen_flags: <defaults>
</compile_context>

<pallas_src>
import jax
import jax.numpy as jnp
from jax.experimental import pallas as pl
from jax.experimental.pallas import tpu as pltpu

_MAX_TILE_B = 1024  # <4 MiB of VMEM per tile even at 1024 -> safe on every gen


def _round_up(x, m):
    return ((x + m - 1) // m) * m


def _cdiv(a, b):
    return (a + b - 1) // b


def _choose_tiling(B):
    """Pick (padded_batch, tile_b): >=2 tiles when possible, waste <8 rows/tile."""
    bp8 = _round_up(max(B, 1), 8)
    n_tiles = max(1 if bp8 <= 8 else 2, _cdiv(bp8, _MAX_TILE_B))
    tile_b = _round_up(_cdiv(bp8, n_tiles), 8)
    return n_tiles * tile_b, tile_b


# ----------------------------------------------------------------------------
# Kernels.
# ----------------------------------------------------------------------------
def _trunk(state_ref, w1_ref, b1_ref):
    # Cast the f32 state tile to bf16 in VMEM (no extra HBM traffic), bf16 MXU
    # matmul with f32 accumulation, f32 bias + ReLU (v5e-friendly).
    x = state_ref[...].astype(w1_ref.dtype)
    h = jnp.dot(x, w1_ref[...], preferred_element_type=jnp.float32)
    return jnp.maximum(h + b1_ref[...], 0.0)


def _fwd_kernel(state_ref, w1_ref, b1_ref, wa_ref, ba_ref, wc_ref, bc_ref,
                action_ref, value_ref):
    h = _trunk(state_ref, w1_ref, b1_ref)
    a = jnp.dot(h.astype(wa_ref.dtype), wa_ref[...],
                preferred_element_type=jnp.float32) + ba_ref[...]
    action_ref[...] = jnp.tanh(a).astype(action_ref.dtype)
    # Critic head fully in f32 (value precision matters for bootstrapping).
    v = jnp.dot(h, wc_ref[...], preferred_element_type=jnp.float32) + bc_ref[...]
    value_ref[...] = v.astype(value_ref.dtype)


def _actor_kernel(state_ref, w1_ref, b1_ref, wa_ref, ba_ref, action_ref):
    h = _trunk(state_ref, w1_ref, b1_ref)
    a = jnp.dot(h.astype(wa_ref.dtype), wa_ref[...],
                preferred_element_type=jnp.float32) + ba_ref[...]
    action_ref[...] = jnp.tanh(a).astype(action_ref.dtype)


def _critic_kernel(state_ref, w1_ref, b1_ref, wc_ref, bc_ref, value_ref):
    h = _trunk(state_ref, w1_ref, b1_ref)
    v = jnp.dot(h, wc_ref[...], preferred_element_type=jnp.float32) + bc_ref[...]
    value_ref[...] = v.astype(value_ref.dtype)


# ----------------------------------------------------------------------------
# Wrapper: pads only the batch rows (if needed), builds grid/BlockSpecs.
# ----------------------------------------------------------------------------
def _run(state, weights, out_dims, kernel):
    B, state_dim = state.shape
    Bp, tile_b = _choose_tiling(B)
    if Bp != B:
        state = jnp.pad(state, ((0, Bp - B), (0, 0)))  # rows only, stays f32
    grid = (Bp // tile_b,)

    def _resident(arr):
        # Constant index_map -> block DMA'd once and kept resident in VMEM.
        return pl.BlockSpec(arr.shape, lambda i: (0, 0))

    in_specs = [pl.BlockSpec((tile_b, state_dim), lambda i: (i, 0))]
    in_specs += [_resident(w) for w in weights]

    out_shape = tuple(jax.ShapeDtypeStruct((Bp, d), jnp.float32) for d in out_dims)
    out_specs = tuple(pl.BlockSpec((tile_b, d), lambda i: (i, 0)) for d in out_dims)

    outs = pl.pallas_call(
        kernel,
        grid=grid,
        in_specs=in_specs,
        out_specs=out_specs,
        out_shape=out_shape,
        compiler_params=pltpu.CompilerParams(
            dimension_semantics=("parallel",)),
    )(state, *weights)
    if not isinstance(outs, (tuple, list)):
        outs = (outs,)
    return tuple(o[:B] for o in outs)


# ----------------------------------------------------------------------------
# Concrete ActorCritic matching the abstract PyTorch interface.
# ----------------------------------------------------------------------------
class ActorCritic:
    def __init__(self, state_dim, action_dim, hidden_dim=64, *, key):
        self.state_dim = state_dim
        self.action_dim = action_dim
        self.hidden_dim = hidden_dim

        k1, k2, k3 = jax.random.split(key, 3)
        scale = 0.1
        w1 = scale * jax.random.normal(k1, (state_dim, hidden_dim), jnp.float32)
        b1 = jnp.zeros((1, hidden_dim), jnp.float32)
        wa = scale * jax.random.normal(k2, (hidden_dim, action_dim), jnp.float32)
        ba = jnp.zeros((1, action_dim), jnp.float32)
        wc = scale * jax.random.normal(k3, (hidden_dim, 1), jnp.float32)
        bc = jnp.zeros((1, 1), jnp.float32)
        self._common = (w1, b1)
        self._actor = (wa, ba)
        self._critic = (wc, bc)

        # Kernel-ready operands (cast once; no lane padding needed — full-dim
        # blocks are legal and Mosaic tiles small dims internally).
        self._w1_bf = w1.astype(jnp.bfloat16)
        self._b1 = b1                              # f32
        self._wa_bf = wa.astype(jnp.bfloat16)
        self._ba = ba                              # f32
        self._wc = wc                              # f32 (critic kept in f32)
        self._bc = bc                              # f32

    # forward(state) -> (action, value)
    def forward(self, state):
        action, value = _run(
            state,
            weights=(self._w1_bf, self._b1, self._wa_bf, self._ba,
                     self._wc, self._bc),
            out_dims=(self.action_dim, 1),
            kernel=_fwd_kernel)
        return action, value

    def __call__(self, state):
        return self.forward(state)

    def actor_only(self, state):
        (action,) = _run(
            state,
            weights=(self._w1_bf, self._b1, self._wa_bf, self._ba),
            out_dims=(self.action_dim,),
            kernel=_actor_kernel)
        return action

    def critic_only(self, state):
        (value,) = _run(
            state,
            weights=(self._w1_bf, self._b1, self._wc, self._bc),
            out_dims=(1,),
            kernel=_critic_kernel)
        return value

    def get_actor(self):
        return self._actor

    def get_critic(self):
        return self._critic

    def get_common(self):
        return self._common


# ----------------------------------------------------------------------------
# Pure-JAX f32 reference.
# ----------------------------------------------------------------------------
def _reference(state, common, actor, critic):
    w1, b1 = common
    wa, ba = actor
    wc, bc = critic
    h = jnp.maximum(state @ w1 + b1, 0.0)
    return jnp.tanh(h @ wa + ba), h @ wc + bc


if __name__ == "__main__":
    key = jax.random.PRNGKey(0)
    k_state, k_params = jax.random.split(key)

    B, state_dim, hidden_dim, action_dim = 8, 32, 64, 8
    state = jax.random.normal(k_state, (B, state_dim), jnp.float32)

    model = ActorCritic(state_dim, action_dim, hidden_dim, key=k_params)

    action, value = model.forward(state)
    a_only = model.actor_only(state)
    v_only = model.critic_only(state)

    # Exercise the multi-tile + row-padded path (grid > 1, B not tile-aligned).
    B2 = 20
    state_big = jax.random.normal(k_state, (B2, state_dim), jnp.float32)
    action_big, value_big = model.forward(state_big)

    jax.block_until_ready((action, value, a_only, v_only, action_big, value_big))

    ref_action, ref_value = _reference(
        state, model.get_common(), model.get_actor(), model.get_critic())
    ref_action_big, ref_value_big = _reference(
        state_big, model.get_common(), model.get_actor(), model.get_critic())

    assert action.shape == (B, action_dim)
    assert value.shape == (B, 1)
    assert a_only.shape == (B, action_dim)
    assert v_only.shape == (B, 1)
    assert action_big.shape == (B2, action_dim)
    assert value_big.shape == (B2, 1)
    # bf16 matmul operands in trunk/actor -> relaxed tolerances vs f32 reference.
    assert jnp.allclose(action, ref_action, atol=5e-2, rtol=5e-2)
    assert jnp.allclose(value, ref_value, atol=5e-2, rtol=5e-2)
    assert jnp.allclose(a_only, ref_action, atol=5e-2, rtol=5e-2)
    assert jnp.allclose(v_only, ref_value, atol=5e-2, rtol=5e-2)
    assert jnp.allclose(action_big, ref_action_big, atol=5e-2, rtol=5e-2)
    assert jnp.allclose(value_big, ref_value_big, atol=5e-2, rtol=5e-2)

    print("KERNEL_OK")
</pallas_src>

<mosaic_0001>
module attributes {stable_mosaic.version = 11 : i64} {
  func.func @_fwd_kernel(%arg0: i32, %arg1: memref<8x32xf32, #tpu.memory_space<vmem>>, %arg2: memref<32x64xbf16, #tpu.memory_space<vmem>>, %arg3: memref<1x64xf32, #tpu.memory_space<vmem>>, %arg4: memref<64x8xbf16, #tpu.memory_space<vmem>>, %arg5: memref<1x8xf32, #tpu.memory_space<vmem>>, %arg6: memref<64x1xf32, #tpu.memory_space<vmem>>, %arg7: memref<1x1xf32, #tpu.memory_space<vmem>>, %arg8: memref<8x8xf32, #tpu.memory_space<vmem>>, %arg9: memref<8x1xf32, #tpu.memory_space<vmem>>) attributes {dimension_semantics = [#tpu.dimension_semantics<parallel>], iteration_bounds = array<i64: 1>, scalar_prefetch = 0 : i64, scratch_operands = 0 : i64, tpu.core_type = #tpu.core_type<tc>, window_params = [{transform_indices = @transform_0, window_bounds = array<i64: 8, 32>}, {pipeline_mode = #tpu.pipeline_mode<synchronous>, transform_indices = @transform_1, window_bounds = array<i64: 32, 64>}, {pipeline_mode = #tpu.pipeline_mode<synchronous>, transform_indices = @transform_2, window_bounds = array<i64: 1, 64>}, {pipeline_mode = #tpu.pipeline_mode<synchronous>, transform_indices = @transform_3, window_bounds = array<i64: 64, 8>}, {pipeline_mode = #tpu.pipeline_mode<synchronous>, transform_indices = @transform_4, window_bounds = array<i64: 1, 8>}, {pipeline_mode = #tpu.pipeline_mode<synchronous>, transform_indices = @transform_5, window_bounds = array<i64: 64, 1>}, {pipeline_mode = #tpu.pipeline_mode<synchronous>, transform_indices = @transform_6, window_bounds = array<i64: 1, 1>}, {transform_indices = @transform_7, window_bounds = array<i64: 8, 8>}, {transform_indices = @transform_8, window_bounds = array<i64: 8, 1>}]} {
    %c0 = arith.constant 0 : index
    %c0_0 = arith.constant 0 : index
    %0 = vector.load %arg1[%c0, %c0_0] : memref<8x32xf32, #tpu.memory_space<vmem>>, vector<8x32xf32>
    %1 = arith.truncf %0 : vector<8x32xf32> to vector<8x32xbf16>
    %c0_1 = arith.constant 0 : index
    %c0_2 = arith.constant 0 : index
    %2 = vector.load %arg2[%c0_1, %c0_2] : memref<32x64xbf16, #tpu.memory_space<vmem>>, vector<32x64xbf16>
    %cst = arith.constant dense<0.000000e+00> : vector<8x64xf32>
    %3 = tpu.matmul %1, %2, %cst {dimension_numbers = #tpu.dot_dimension_numbers<[1], [0], [0], [1], [0, 0, 1, 1], [], []>} : vector<8x32xbf16>, vector<32x64xbf16>, vector<8x64xf32> -> vector<8x64xf32>
    %c0_3 = arith.constant 0 : index
    %c0_4 = arith.constant 0 : index
    %4 = vector.load %arg3[%c0_3, %c0_4] : memref<1x64xf32, #tpu.memory_space<vmem>>, vector<1x64xf32>
    %5 = vector.broadcast %4 : vector<1x64xf32> to vector<8x64xf32>
    %6 = arith.addf %3, %5 : vector<8x64xf32>
    %cst_5 = arith.constant 0.000000e+00 : f32
    %7 = vector.broadcast %cst_5 : f32 to vector<8x64xf32>
    %8 = arith.maximumf %6, %7 : vector<8x64xf32>
    %9 = arith.truncf %8 : vector<8x64xf32> to vector<8x64xbf16>
    %c0_6 = arith.constant 0 : index
    %c0_7 = arith.constant 0 : index
    %10 = vector.load %arg4[%c0_6, %c0_7] : memref<64x8xbf16, #tpu.memory_space<vmem>>, vector<64x8xbf16>
    %cst_8 = arith.constant dense<0.000000e+00> : vector<8x8xf32>
    %11 = tpu.matmul %9, %10, %cst_8 {dimension_numbers = #tpu.dot_dimension_numbers<[1], [0], [0], [1], [0, 0, 1, 1], [], []>} : vector<8x64xbf16>, vector<64x8xbf16>, vector<8x8xf32> -> vector<8x8xf32>
    %c0_9 = arith.constant 0 : index
    %c0_10 = arith.constant 0 : index
    %12 = vector.load %arg5[%c0_9, %c0_10] : memref<1x8xf32, #tpu.memory_space<vmem>>, vector<1x8xf32>
    %13 = vector.broadcast %12 : vector<1x8xf32> to vector<8x8xf32>
    %14 = arith.addf %11, %13 : vector<8x8xf32>
    %15 = math.tanh %14 : vector<8x8xf32>
    %c0_11 = arith.constant 0 : index
    %c0_12 = arith.constant 0 : index
    %16 = vector.load %arg8[%c0_11, %c0_12] : memref<8x8xf32, #tpu.memory_space<vmem>>, vector<8x8xf32>
    tpu.vector_store %arg8[%c0_11, %c0_12], %15 {strides = array<i32>} : memref<8x8xf32, #tpu.memory_space<vmem>>, vector<8x8xf32>,
    %c0_13 = arith.constant 0 : index
    %c0_14 = arith.constant 0 : index
    %17 = vector.load %arg6[%c0_13, %c0_14] : memref<64x1xf32, #tpu.memory_space<vmem>>, vector<64x1xf32>
    %cst_15 = arith.constant dense<0.000000e+00> : vector<8x1xf32>
    %18 = tpu.matmul %8, %17, %cst_15 {dimension_numbers = #tpu.dot_dimension_numbers<[1], [0], [0], [1], [0, 0, 1, 1], [], []>} : vector<8x64xf32>, vector<64x1xf32>, vector<8x1xf32> -> vector<8x1xf32>
    %c0_16 = arith.constant 0 : index
    %c0_17 = arith.constant 0 : index
    %19 = vector.load %arg7[%c0_16, %c0_17] : memref<1x1xf32, #tpu.memory_space<vmem>>, vector<1x1xf32>
    %20 = vector.broadcast %19 : vector<1x1xf32> to vector<8x1xf32>
    %21 = arith.addf %18, %20 : vector<8x1xf32>
    %c0_18 = arith.constant 0 : index
    %c0_19 = arith.constant 0 : index
    %22 = vector.load %arg9[%c0_18, %c0_19] : memref<8x1xf32, #tpu.memory_space<vmem>>, vector<8x1xf32>
    tpu.vector_store %arg9[%c0_18, %c0_19], %21 {strides = array<i32>} : memref<8x1xf32, #tpu.memory_space<vmem>>, vector<8x1xf32>,
    return
  }
  func.func @transform_0(%arg0: i32) -> (i32, i32) {
    %c0_i32 = arith.constant 0 : i32
    %c0_i32_0 = arith.constant 0 : i32
    return %arg0, %c0_i32 : i32, i32
  }
  func.func @transform_1(%arg0: i32) -> (i32, i32) {
    %c0_i32 = arith.constant 0 : i32
    %c0_i32_0 = arith.constant 0 : i32
    %c0_i32_1 = arith.constant 0 : i32
    return %c0_i32, %c0_i32_0 : i32, i32
  }
  func.func @transform_2(%arg0: i32) -> (i32, i32) {
    %c0_i32 = arith.constant 0 : i32
    %c0_i32_0 = arith.constant 0 : i32
    %c0_i32_1 = arith.constant 0 : i32
    return %c0_i32, %c0_i32_0 : i32, i32
  }
  func.func @transform_3(%arg0: i32) -> (i32, i32) {
    %c0_i32 = arith.constant 0 : i32
    %c0_i32_0 = arith.constant 0 : i32
    %c0_i32_1 = arith.constant 0 : i32
    return %c0_i32, %c0_i32_0 : i32, i32
  }
  func.func @transform_4(%arg0: i32) -> (i32, i32) {
    %c0_i32 = arith.constant 0 : i32
    %c0_i32_0 = arith.constant 0 : i32
    %c0_i32_1 = arith.constant 0 : i32
    return %c0_i32, %c0_i32_0 : i32, i32
  }
  func.func @transform_5(%arg0: i32) -> (i32, i32) {
    %c0_i32 = arith.constant 0 : i32
    %c0_i32_0 = arith.constant 0 : i32
    %c0_i32_1 = arith.constant 0 : i32
    return %c0_i32, %c0_i32_0 : i32, i32
  }
  func.func @transform_6(%arg0: i32) -> (i32, i32) {
    %c0_i32 = arith.constant 0 : i32
    %c0_i32_0 = arith.constant 0 : i32
    %c0_i32_1 = arith.constant 0 : i32
    return %c0_i32, %c0_i32_0 : i32, i32
  }
  func.func @transform_7(%arg0: i32) -> (i32, i32) {
    %c0_i32 = arith.constant 0 : i32
    %c0_i32_0 = arith.constant 0 : i32
    return %arg0, %c0_i32 : i32, i32
  }
  func.func @transform_8(%arg0: i32) -> (i32, i32) {
    %c0_i32 = arith.constant 0 : i32
    %c0_i32_0 = arith.constant 0 : i32
    return %arg0, %c0_i32 : i32, i32
  }
}

</mosaic_0001>

<llo_original>
// kernel: tpu_custom_call.1
$region0: #{tpu_custom_call.1}
  #allocation0 [shape = 'u32[]', space=smem, size = 0x4, offset = 0x4, fixed_abs, tag = 'smem constant byte address 0x4 - core index']
  #allocation1 [shape = 'u32[144,128]{1,0:T(1,128)}', space=vmem, size = 0x12000, scoped, tag = 'internal scratch']
  #allocation2 [shape = 'f32[1,1]{1,0:T(1,128)S(1)}', space=vmem, size = 0x200, scoped, tag = 'scoped memory for tpu_custom_call.1']
  %s0 = inlined_call_operand.vmem [shape: f32[8,32], index: 0, kind: input, shape index: {}]
  %s1 = inlined_call_operand.vmem [shape: bf16[32,64], index: 1, kind: input, shape index: {}]
  %s2 = inlined_call_operand.vmem [shape: f32[1,64], index: 2, kind: input, shape index: {}]
  %s3 = inlined_call_operand.vmem [shape: bf16[64,8], index: 3, kind: input, shape index: {}]
  %s4 = inlined_call_operand.vmem [shape: f32[1,8], index: 4, kind: input, shape index: {}]
  %s5 = inlined_call_operand.vmem [shape: f32[64,1], index: 5, kind: input, shape index: {}]
  %s6 = inlined_call_operand.<no memory space> [shape: f32[1,1], index: 6, kind: input, shape index: {}]
  %s7 = inlined_call_operand.hbm [shape: f32[8,8], index: 7, kind: output, shape index: {0}]
  %s8 = inlined_call_operand.vmem [shape: f32[8,1], index: 8, kind: output, shape index: {1}]
  %9 = xla_tuple %s7, %s8
  %s10 = sld [smem:[#allocation0]]
  $region46: #{tpu_custom_call.1} parent=0
    _
  %s12 = ssub.s32 1, %s10
  %s13 = scalar_select 0, %s12, %s10
  %v14 = vstv %s6
  %15 = vst [vmem:[#allocation2] sm:$0x1] %v14
  $region1: #{tpu_custom_call.1} parent=0
    #allocation3 [shape = 'u8[4096]{0}', space=vmem, size = 0x1000, scoped, tag = 'output window, operand 0, single buffered']
    #allocation4 [shape = 's32[1]{0}', space=sflag, size = 0x4, scoped, tag = 'scoped memory for tpu_custom_call.1']
    %16 = vsyncpa [#allocation4], 0
    // Predicated region
    $region2: #{tpu_custom_call.1} parent=1 // pred_check
      _
    $region3: #{tpu_custom_call.1} parent=1 // pred_check_branch
      %18 = sbr.rel (0) target = $region5
    $region4: #{tpu_custom_call.1} parent=1 // pred_region
      _
    $region5: #{tpu_custom_call.1} parent=1 // pred_fallthru
      _
    // Predicated region
    $region6: #{tpu_custom_call.1} parent=1 // pred_check
      _
    $region7: #{tpu_custom_call.1} parent=1 // pred_check_branch
      %20 = sbr.rel (0) target = $region9
    $region8: #{tpu_custom_call.1} parent=1 // pred_region
      _
    $region9: #{tpu_custom_call.1} parent=1 // pred_fallthru
      _
    // Predicated region
    $region10: #{tpu_custom_call.1} parent=1 // pred_check
      _
    $region11: #{tpu_custom_call.1} parent=1 // pred_check_branch
      %22 = sbr.rel (0) target = $region13
    $region12: #{tpu_custom_call.1} parent=1 // pred_region
      _
    $region13: #{tpu_custom_call.1} parent=1 // pred_fallthru
      _
    // Predicated region
    $region14: #{tpu_custom_call.1} parent=1 // pred_check
      _
    $region15: #{tpu_custom_call.1} parent=1 // pred_check_branch
      %24 = sbr.rel (0) target = $region17
    $region16: #{tpu_custom_call.1} parent=1 // pred_region
      _
    $region17: #{tpu_custom_call.1} parent=1 // pred_fallthru
      _
    // Predicated region
    $region18: #{tpu_custom_call.1} parent=1 // pred_check
      _
    $region19: #{tpu_custom_call.1} parent=1 // pred_check_branch
      %26 = sbr.rel (0) target = $region21
    $region20: #{tpu_custom_call.1} parent=1 // pred_region
      _
    $region21: #{tpu_custom_call.1} parent=1 // pred_fallthru
      _
    // Predicated region
    $region22: #{tpu_custom_call.1} parent=1 // pred_check
      _
    $region23: #{tpu_custom_call.1} parent=1 // pred_check_branch
      %28 = sbr.rel (0) target = $region25
    $region24: #{tpu_custom_call.1} parent=1 // pred_region
      _
    $region25: #{tpu_custom_call.1} parent=1 // pred_fallthru
      _
    // Predicated region
    $region26: #{tpu_custom_call.1} parent=1 // pred_check
      _
    $region27: #{tpu_custom_call.1} parent=1 // pred_check_branch
      %30 = sbr.rel (0) target = $region29
    $region28: #{tpu_custom_call.1} parent=1 // pred_region
      _
    $region29: #{tpu_custom_call.1} parent=1 // pred_fallthru
      _
    %v32 = vld [vmem:[%s0] sm:$0xff]
    %v33 = vpack.c.bf16 %v32, %v32
    %v34 = vld [vmem:[%s1] sm:$0xf]
    %v35 = vld [vmem:[%s1 + $0x4] sm:$0xf]
    %v36 = vld [vmem:[%s1 + $0x8] sm:$0xf]
    %v37 = vld [vmem:[%s1 + $0xc] sm:$0xf]
    %v38 = vld [vmem:[%s2] sm:$0x1]
    %v40 = vlaneseq
    %v41 = vshrl.u32 %v40, 7
    %v42 = vsub.s32 0, %v41
    %v43 = vrot.slane %v38, %v42
    %v49 = vunpack.c.l.b16 %v34
    %v50 = vunpack.c.l.b16 %v35
    %v51 = vunpack.c.l.b16 %v36
    %v52 = vunpack.c.l.b16 %v37
    %v53 = vpack.c.b16 %v50, %v49
    %v54 = vpack.c.b16 %v52, %v51
    %vm57 = vcmask 261120
    %v59 = vsel %vm57, %v33, 0
    %61 = vmatprep.subr.bf16.mxu0 0
    %62 = vmatpush1.bf16.msra.mxu0 %v53
    %63 = vmatprep.subr.bf16.mxu0 0
    %64 = vmatpush1.bf16.msra.mxu0 %v54
    %65 = vmatprep.subr.bf16.mxu0 0
    %66 = vmatpush1.bf16.msra.mxu0 0
    %67 = vmatprep.subr.bf16.mxu0 0
    %68 = vmatpush1.bf16.msra.mxu0 0
    %69 = vmatprep.subr.bf16.mxu0 0
    %70 = vmatpush1.bf16.msra.mxu0 0
    %71 = vmatprep.subr.bf16.mxu0 0
    %72 = vmatpush1.bf16.msra.mxu0 0
    %73 = vmatprep.subr.bf16.mxu0 0
    %74 = vmatpush1.bf16.msra.mxu0 0
    %75 = vmatprep.subr.bf16.mxu0 0
    %76 = vmatpush1.bf16.msra.mxu0 0
    %77 = vmatprep.subr.bf16.mxu0 0
    %78 = vmatpush1.bf16.msra.mxu0 0
    %79 = vmatprep.subr.bf16.mxu0 0
    %80 = vmatpush1.bf16.msra.mxu0 0
    %81 = vmatprep.subr.bf16.mxu0 0
    %82 = vmatpush1.bf16.msra.mxu0 0
    %83 = vmatprep.subr.bf16.mxu0 0
    %84 = vmatpush1.bf16.msra.mxu0 0
    %85 = vmatprep.subr.bf16.mxu0 0
    %86 = vmatpush1.bf16.msra.mxu0 0
    %87 = vmatprep.subr.bf16.mxu0 0
    %88 = vmatpush1.bf16.msra.mxu0 0
    %89 = vmatprep.subr.bf16.mxu0 0
    %90 = vmatpush1.bf16.msra.mxu0 0
    %91 = vmatprep.subr.bf16.mxu0 0
    %92 = vmatpush1.bf16.msra.mxu0 0
    %93 = vmatprep.mubr.bf16.mxu0 0
    %94 = vmatmul.mubr.bf16.gmra.mrb[0].mxu0 %v59
    %v95 = vpop.f32.mrb[0].mxu0
    %v96 = vadd.f32 %v43, %v95
    %v97 = vpop.f32.mrb[0].mxu0
    %v98 = vpop.f32.mrb[0].mxu0
    %v99 = vpop.f32.mrb[0].mxu0
    %100 = vdwg.mxu0
    %v101 = vmax.f32 %v96, 0.0
    %v102 = vpack.c.bf16 %v101, %v101
    %v103 = vld [vmem:[%s3] sm:$0xf]
    %v104 = vld [vmem:[%s3 + $0x4] sm:$0xf]
    %v105 = vld [vmem:[%s3 + $0x8] sm:$0xf]
    %v106 = vld [vmem:[%s3 + $0xc] sm:$0xf]
    %v107 = vld [vmem:[%s3 + $0x10] sm:$0xf]
    %v108 = vld [vmem:[%s3 + $0x14] sm:$0xf]
    %v109 = vld [vmem:[%s3 + $0x18] sm:$0xf]
    %v110 = vld [vmem:[%s3 + $0x1c] sm:$0xf]
    %v111 = vld [vmem:[%s4] sm:$0x1]
    %v113 = vlaneseq
    %v114 = vshrl.u32 %v113, 7
    %v115 = vsub.s32 0, %v114
    %v116 = vrot.slane %v111, %v115
    %v126 = vunpack.c.l.b16 %v103
    %v127 = vunpack.c.l.b16 %v104
    %v128 = vunpack.c.l.b16 %v105
    %v129 = vunpack.c.l.b16 %v106
    %v130 = vunpack.c.l.b16 %v107
    %v131 = vunpack.c.l.b16 %v108
    %v132 = vunpack.c.l.b16 %v109
    %v133 = vunpack.c.l.b16 %v110
    %v134 = vpack.c.b16 %v127, %v126
    %v135 = vpack.c.b16 %v129, %v128
    %v136 = vpack.c.b16 %v131, %v130
    %v137 = vpack.c.b16 %v133, %v132
    %vm142 = vcmask 523264
    %v144 = vsel %vm142, %v102, 0
    %146 = vmatprep.subr.bf16.mxu0 0
    %147 = vmatpush1.bf16.msra.mxu0 %v134
    %148 = vmatprep.subr.bf16.mxu0 0
    %149 = vmatpush1.bf16.msra.mxu0 %v135
    %150 = vmatprep.subr.bf16.mxu0 0
    %151 = vmatpush1.bf16.msra.mxu0 %v136
    %152 = vmatprep.subr.bf16.mxu0 0
    %153 = vmatpush1.bf16.msra.mxu0 %v137
    %154 = vmatprep.subr.bf16.mxu0 0
    %155 = vmatpush1.bf16.msra.mxu0 0
    %156 = vmatprep.subr.bf16.mxu0 0
    %157 = vmatpush1.bf16.msra.mxu0 0
    %158 = vmatprep.subr.bf16.mxu0 0
    %159 = vmatpush1.bf16.msra.mxu0 0
    %160 = vmatprep.subr.bf16.mxu0 0
    %161 = vmatpush1.bf16.msra.mxu0 0
    %162 = vmatprep.subr.bf16.mxu0 0
    %163 = vmatpush1.bf16.msra.mxu0 0
    %164 = vmatprep.subr.bf16.mxu0 0
    %165 = vmatpush1.bf16.msra.mxu0 0
    %166 = vmatprep.subr.bf16.mxu0 0
    %167 = vmatpush1.bf16.msra.mxu0 0
    %168 = vmatprep.subr.bf16.mxu0 0
    %169 = vmatpush1.bf16.msra.mxu0 0
    %170 = vmatprep.subr.bf16.mxu0 0
    %171 = vmatpush1.bf16.msra.mxu0 0
    %172 = vmatprep.subr.bf16.mxu0 0
    %173 = vmatpush1.bf16.msra.mxu0 0
    %174 = vmatprep.subr.bf16.mxu0 0
    %175 = vmatpush1.bf16.msra.mxu0 0
    %176 = vmatprep.subr.bf16.mxu0 0
    %177 = vmatpush1.bf16.msra.mxu0 0
    %178 = vmatprep.mubr.bf16.mxu0 0
    %179 = vmatmul.mubr.bf16.gmra.mrb[0].mxu0 %v144
    %v180 = vpop.f32.mrb[0].mxu0
    %v181 = vadd.f32 %v116, %v180
    %v182 = vpop.f32.mrb[0].mxu0
    %v183 = vpop.f32.mrb[0].mxu0
    %v184 = vpop.f32.mrb[0].mxu0
    %185 = vdwg.mxu0
    %v186 = vtanh.pop %v181
    %vm187 = vcmask 64512
    %188 = vst.msk [vmem:[#allocation3] sm:$0xff] %vm187, %v186
    %v189 = vld [vmem:[%s5] sm:$0xff]
    %v190 = vld [vmem:[%s5 + $0x8] sm:$0xff]
    %v191 = vld [vmem:[%s5 + $0x10] sm:$0xff]
    %v192 = vld [vmem:[%s5 + $0x18] sm:$0xff]
    %v193 = vld [vmem:[%s5 + $0x20] sm:$0xff]
    %v194 = vld [vmem:[%s5 + $0x28] sm:$0xff]
    %v195 = vld [vmem:[%s5 + $0x30] sm:$0xff]
    %v196 = vld [vmem:[%s5 + $0x38] sm:$0xff]
    %v197 = vld [vmem:[#allocation2] sm:$0x1]
    %v199 = vlaneseq
    %v200 = vshrl.u32 %v199, 7
    %v201 = vsub.s32 0, %v200
    %v202 = vrot.slane %v197, %v201
    %v205 = vsel %vm142, %v101, 0
    %207 = vmatprep.subr.mxu0 0.0
    %208 = vmatpush1.msra.mxu0 %v189
    %209 = vmatprep.subr.mxu0 0.0
    %210 = vmatpush1.msra.mxu0 %v190
    %211 = vmatprep.subr.mxu0 0.0
    %212 = vmatpush1.msra.mxu0 %v191
    %213 = vmatprep.subr.mxu0 0.0
    %214 = vmatpush1.msra.mxu0 %v192
    %215 = vmatprep.subr.mxu0 0.0
    %216 = vmatpush1.msra.mxu0 %v193
    %217 = vmatprep.subr.mxu0 0.0
    %218 = vmatpush1.msra.mxu0 %v194
    %219 = vmatprep.subr.mxu0 0.0
    %220 = vmatpush1.msra.mxu0 %v195
    %221 = vmatprep.subr.mxu0 0.0
    %222 = vmatpush1.msra.mxu0 %v196
    %223 = vmatprep.subr.mxu0 0.0
    %224 = vmatpush1.msra.mxu0 0.0
    %225 = vmatprep.subr.mxu0 0.0
    %226 = vmatpush1.msra.mxu0 0.0
    %227 = vmatprep.subr.mxu0 0.0
    %228 = vmatpush1.msra.mxu0 0.0
    %229 = vmatprep.subr.mxu0 0.0
    %230 = vmatpush1.msra.mxu0 0.0
    %231 = vmatprep.subr.mxu0 0.0
    %232 = vmatpush1.msra.mxu0 0.0
    %233 = vmatprep.subr.mxu0 0.0
    %234 = vmatpush1.msra.mxu0 0.0
    %235 = vmatprep.subr.mxu0 0.0
    %236 = vmatpush1.msra.mxu0 0.0
    %237 = vmatprep.subr.mxu0 0.0
    %238 = vmatpush1.msra.mxu0 0.0
    %239 = vmatprep.subr.mxu0 0.0
    %240 = vmatpush1.msra.mxu0 0.0
    %241 = vmatprep.subr.mxu0 0.0
    %242 = vmatpush1.msra.mxu0 0.0
    %243 = vmatprep.subr.mxu0 0.0
    %244 = vmatpush1.msra.mxu0 0.0
    %245 = vmatprep.subr.mxu0 0.0
    %246 = vmatpush1.msra.mxu0 0.0
    %247 = vmatprep.subr.mxu0 0.0
    %248 = vmatpush1.msra.mxu0 0.0
    %249 = vmatprep.subr.mxu0 0.0
    %250 = vmatpush1.msra.mxu0 0.0
    %251 = vmatprep.subr.mxu0 0.0
    %252 = vmatpush1.msra.mxu0 0.0
    %253 = vmatprep.subr.mxu0 0.0
    %254 = vmatpush1.msra.mxu0 0.0
    %255 = vmatprep.subr.mxu0 0.0
    %256 = vmatpush1.msra.mxu0 0.0
    %257 = vmatprep.subr.mxu0 0.0
    %258 = vmatpush1.msra.mxu0 0.0
    %259 = vmatprep.subr.mxu0 0.0
    %260 = vmatpush1.msra.mxu0 0.0
    %261 = vmatprep.subr.mxu0 0.0
    %262 = vmatpush1.msra.mxu0 0.0
    %263 = vmatprep.subr.mxu0 0.0
    %264 = vmatpush1.msra.mxu0 0.0
    %265 = vmatprep.subr.mxu0 0.0
    %266 = vmatpush1.msra.mxu0 0.0
    %267 = vmatprep.subr.mxu0 0.0
    %268 = vmatpush1.msra.mxu0 0.0
    %269 = vmatprep.subr.mxu0 0.0
    %270 = vmatpush1.msra.mxu0 0.0
    %271 = vmatprep.mubr.f32.mxu0 0.0
    %272 = vmatmul.mubr.f32.gmra.mrb[0].mxu0 %v205
    %v273 = vpop.f32.mrb[0].mxu0
    %v274 = vadd.f32 %v202, %v273
    %v275 = vpop.f32.mrb[0].mxu0
    %276 = vdwg.mxu0
    %vm277 = vcmask 7168
    %278 = vst.msk [vmem:[%s8] sm:$0xff] %vm277, %v274
    // Predicated region
    $region30: #{tpu_custom_call.1} parent=1 // pred_check
      _
    $region31: #{tpu_custom_call.1} parent=1 // pred_check_branch
      %280 = sbr.rel (0) target = $region33
    $region32: #{tpu_custom_call.1} parent=1 // pred_region
      %s282 = ssub.s32 128, 128
      %283 = vsyncadd [#allocation4], %s282
      %s285 = sshll.u32 [#allocation3], 4
      %s286 = int_to_ptr.vmem [resolvable:$true] %s285
      %288 = dma.vmem_to_hbm [thread:$0]  %s286, 128, %s7, [#allocation4]
    $region33: #{tpu_custom_call.1} parent=1 // pred_fallthru
      _
    // Predicated region
    $region34: #{tpu_custom_call.1} parent=1 // pred_check
      _
    $region35: #{tpu_custom_call.1} parent=1 // pred_check_branch
      %290 = sbr.rel (0) target = $region37
    $region36: #{tpu_custom_call.1} parent=1 // pred_region
      _
    $region37: #{tpu_custom_call.1} parent=1 // pred_fallthru
      _
    // Predicated region
    $region38: #{tpu_custom_call.1} parent=1 // pred_check
      _
    $region39: #{tpu_custom_call.1} parent=1 // pred_check_branch
      %292 = sbr.rel (0) target = $region41
    $region40: #{tpu_custom_call.1} parent=1 // pred_region
      %293 = dma.done [#allocation4], 128
    $region41: #{tpu_custom_call.1} parent=1 // pred_fallthru
      _
    // Predicated region
    $region42: #{tpu_custom_call.1} parent=1 // pred_check
      _
    $region43: #{tpu_custom_call.1} parent=1 // pred_check_branch
      %295 = sbr.rel (0) target = $region45
    $region44: #{tpu_custom_call.1} parent=1 // pred_region
      _
    $region45: #{tpu_custom_call.1} parent=1 // pred_fallthru
      _
    %296 = vsyncpa [#allocation4], 1

</llo_original>
